<compile_context>
chip_gen: v5e
topology: v5e:2x2
jax: 0.10.0
libtpu: 0.0.40
codegen_flags: <defaults>
</compile_context>

<pallas_src>
import functools

import jax
import jax.numpy as jnp
from jax import lax
from jax.experimental import pallas as pl
from jax.experimental.pallas import tpu as pltpu

_NBUF_H = 32                  # outstanding history-row DMAs (power of 2)
_NBUF_T = 16                  # outstanding target-row DMAs (power of 2)
_SMEM_IDS_BUDGET = 512 * 1024  # bytes of id data allowed in SMEM per call
_VMEM_TABLE_BUDGET = 24 << 20  # double-buffered table bytes allowed in VMEM
_VMEM_HISTBUF_BUDGET = 24 << 20


def _round_up(x, m):
    return -(-x // m) * m


def _finalize(hist_ids, sum_hist, tgt_rows, bias_ref, out_ref, alpha, n_items):
    """Shared epilogue: logit = b_u + b_i + (sum_hist . target) / num^alpha."""
    mask = hist_ids == n_items                                    # (TB, H)
    # NOTE: faithfully reproduces the reference module, which normalizes by the
    # count of *masked* (target + padding) entries, clamped at 1e-8.
    num = jnp.sum(mask.astype(jnp.float32), axis=1, keepdims=True)
    num = jnp.maximum(num, 1e-8)
    if alpha == 0.5:
        inv = lax.rsqrt(num)                  # EUP rsqrt instead of pow+divide
    elif alpha == 1.0:
        inv = 1.0 / num
    else:
        inv = num ** jnp.float32(-alpha)
    dot = jnp.sum(sum_hist * tgt_rows, axis=1, keepdims=True)     # (TB, 1)
    out_ref[...] = (bias_ref[...] + dot * inv).astype(out_ref.dtype)


# --------------------------------------------------------------------------- #
# Path A: tables resident in VMEM (small / medium vocab).                      #
# --------------------------------------------------------------------------- #
def _fism_kernel_vmem(hist_flat_ref, item_ref,              # scalar prefetch (SMEM)
                      hist_ids_ref, bias_ref,               # VMEM blocks
                      embed_hist_ref, embed_target_ref,     # VMEM-resident tables
                      out_ref,                              # (TB, 1)
                      sum_ref, tgt_ref,                     # scratch (TB, F) f32
                      *, alpha, n_items, inner_unroll):
    i = pl.program_id(0)
    tb, hlen = hist_ids_ref.shape
    f = embed_hist_ref.shape[1]
    base_h = i * (tb * hlen)
    base_t = i * tb

    def row_body(b, carry):
        def h_body(h, acc):
            idx = hist_flat_ref[base_h + b * hlen + h]
            w = (idx != n_items).astype(jnp.float32)          # mask multiply
            return acc + embed_hist_ref[idx].astype(jnp.float32) * w

        acc = lax.fori_loop(0, hlen, h_body,
                            jnp.zeros((f,), jnp.float32), unroll=inner_unroll)
        sum_ref[b, :] = acc
        t_idx = item_ref[base_t + b]
        tgt_ref[b, :] = embed_target_ref[t_idx].astype(jnp.float32)
        return carry

    lax.fori_loop(0, tb, row_body, 0)

    _finalize(hist_ids_ref[...], sum_ref[...], tgt_ref[...],
              bias_ref, out_ref, alpha, n_items)


# --------------------------------------------------------------------------- #
# Path B: HBM tables + slot-pipelined row DMAs (large vocab).                  #
# --------------------------------------------------------------------------- #
def _fism_kernel_hbm(hist_flat_ref, item_ref,               # scalar prefetch (SMEM)
                     hist_ids_ref, bias_ref,                # VMEM blocks
                     embed_hist_hbm, embed_target_hbm,      # HBM (pl.ANY)
                     out_ref,                               # (TB, 1)
                     hist_buf, tgt_buf, hsems, tsems,       # scratch
                     *, alpha, n_items):
    i = pl.program_id(0)
    tb, hlen = hist_ids_ref.shape
    n_h = tb * hlen
    base_h = i * n_h
    base_t = i * tb

    def h_start(j, idx):
        pltpu.make_async_copy(embed_hist_hbm.at[idx],
                              hist_buf.at[j // hlen, j % hlen],
                              hsems.at[j & (_NBUF_H - 1)]).start()

    def h_wait(j):
        # Constant source view: the wait only needs the semaphore / dst size,
        # so no SMEM index re-read is required here.
        pltpu.make_async_copy(embed_hist_hbm.at[0],
                              hist_buf.at[j // hlen, j % hlen],
                              hsems.at[j & (_NBUF_H - 1)]).wait()

    def t_start(b):
        pltpu.make_async_copy(embed_target_hbm.at[item_ref[base_t + b]],
                              tgt_buf.at[b],
                              tsems.at[b & (_NBUF_T - 1)]).start()

    def t_wait(b):
        pltpu.make_async_copy(embed_target_hbm.at[0],
                              tgt_buf.at[b],
                              tsems.at[b & (_NBUF_T - 1)]).wait()

    # Prime the short target stream first so it completes under the history
    # gather, then prime the history stream.
    def t_prime(b, c):
        t_start(b)
        return c
    lax.fori_loop(0, min(_NBUF_T, tb), t_prime, 0, unroll=True)

    def h_prime(j, c):
        idx = hist_flat_ref[base_h + j]
        @pl.when(idx != n_items)              # skip padding / target-masked rows
        def _():
            h_start(j, idx)
        return c
    lax.fori_loop(0, min(_NBUF_H, n_h), h_prime, 0, unroll=True)

    # Main drain: wait slot j, immediately refill it with row j + _NBUF_H.
    def h_drain(j, c):
        nxt = j + _NBUF_H
        in_rng = nxt < n_h
        # Pre-read the indices BEFORE the wait (wait breaks SMEM forwarding).
        idx_nxt = hist_flat_ref[base_h + jnp.where(in_rng, nxt, 0)]
        idx_cur = hist_flat_ref[base_h + j]

        @pl.when(idx_cur != n_items)
        def _():
            h_wait(j)

        @pl.when(jnp.logical_and(in_rng, idx_nxt != n_items))
        def _():
            h_start(nxt, idx_nxt)
        return c
    lax.fori_loop(0, n_h, h_drain, 0, unroll=4)

    def t_drain(b, c):
        nb = b + _NBUF_T
        t_wait(b)
        @pl.when(nb < tb)
        def _():
            t_start(nb)
        return c
    lax.fori_loop(0, tb, t_drain, 0, unroll=4)

    hist_ids = hist_ids_ref[...]                               # (TB, H) int32
    valid = hist_ids != n_items
    gathered = hist_buf[...].astype(jnp.float32)               # (TB, H, F)
    # where-select (not multiply): rows whose DMA was skipped may hold stale or
    # uninitialized VMEM data; the select keeps the sum finite and exact.
    sum_hist = jnp.sum(jnp.where(valid[:, :, None], gathered, 0.0), axis=1)

    _finalize(hist_ids, sum_hist, tgt_buf[...].astype(jnp.float32),
              bias_ref, out_ref, alpha, n_items)


# --------------------------------------------------------------------------- #
# Wrapper                                                                      #
# --------------------------------------------------------------------------- #
def _fism_chunk(user_idx, item_idx, params, trn_pos_per_user, alpha, path):
    embed_hist = params["embed_hist"]
    embed_target = params["embed_target"]
    V, F = embed_hist.shape
    n_items = V - 1
    B = user_idx.shape[0]
    H = trn_pos_per_user.shape[1]
    itemsize = embed_hist.dtype.itemsize

    user_idx = user_idx.astype(jnp.int32)
    item_idx = item_idx.astype(jnp.int32)

    if path is None:
        use_vmem_tables = 2 * (2 * V * F * itemsize) <= _VMEM_TABLE_BUDGET
    else:
        use_vmem_tables = path == "vmem"

    # Batch tile: big tiles amortize the ~0.35us/step grid overhead; keep >= 2
    # tiles for large batches so the grid shards across v7x's two TensorCores.
    if B >= 2048:
        TB = 512
    elif B >= 256:
        TB = 128
    else:
        TB = _round_up(B, 8)
    if not use_vmem_tables:
        TB = min(TB, max(8, (_VMEM_HISTBUF_BUDGET // (H * F * itemsize)) // 8 * 8))
    nt = -(-B // TB)
    B_pad = nt * TB
    pad = B_pad - B

    # Cheap index-only glue in the wrapper:
    #  * per-user history rows (the module's trn_pos_per_user[user_idx]),
    #  * target-collision entries pre-substituted with the padding id so one
    #    compare drives both the DMA-skip and the mask/num math,
    #  * the two embedding_dim==1 biases pre-summed into a single (B,) vector.
    hist_ids = trn_pos_per_user[user_idx].astype(jnp.int32)            # (B, H)
    hist_sub = jnp.where(hist_ids == item_idx[:, None], n_items, hist_ids)
    bias = params["bias_user"][user_idx, 0] + params["bias_item"][item_idx, 0]

    hist_p = jnp.pad(hist_sub, ((0, pad), (0, 0)), constant_values=n_items)
    item_p = jnp.pad(item_idx, (0, pad), constant_values=n_items)
    bias_p = jnp.pad(bias.astype(jnp.float32), (0, pad))

    id_specs = [
        pl.BlockSpec((TB, H), lambda i, *_: (i, 0)),     # substituted history ids
        pl.BlockSpec((TB, 1), lambda i, *_: (i, 0)),     # b_u + b_i
    ]
    out_spec = pl.BlockSpec((TB, 1), lambda i, *_: (i, 0))   # minimal writeback

    if use_vmem_tables:
        V8 = _round_up(V, 8)
        eh = jnp.pad(embed_hist, ((0, V8 - V), (0, 0)))
        et = jnp.pad(embed_target, ((0, V8 - V), (0, 0)))
        kernel = functools.partial(_fism_kernel_vmem, alpha=float(alpha),
                                   n_items=int(n_items),
                                   inner_unroll=min(8, H))
        in_specs = id_specs + [
            pl.BlockSpec((V8, F), lambda i, *_: (0, 0)),  # table resident in VMEM
            pl.BlockSpec((V8, F), lambda i, *_: (0, 0)),
        ]
        scratch = [pltpu.VMEM((TB, F), jnp.float32),
                   pltpu.VMEM((TB, F), jnp.float32)]
        tables = (eh, et)
        vmem_need = 2 * (2 * V8 * F * itemsize) + 2 * TB * F * 4
    else:
        kernel = functools.partial(_fism_kernel_hbm, alpha=float(alpha),
                                   n_items=int(n_items))
        in_specs = id_specs + [
            pl.BlockSpec(memory_space=pl.ANY),            # embed_hist stays in HBM
            pl.BlockSpec(memory_space=pl.ANY),            # embed_target stays in HBM
        ]
        scratch = [pltpu.VMEM((TB, H, F), embed_hist.dtype),
                   pltpu.VMEM((TB, F), embed_target.dtype),
                   pltpu.SemaphoreType.DMA((_NBUF_H,)),
                   pltpu.SemaphoreType.DMA((_NBUF_T,))]
        tables = (embed_hist, embed_target)
        vmem_need = TB * H * F * itemsize + TB * F * itemsize

    vmem_limit = int(max(vmem_need + 2 * (TB * H * 4 + TB * 8) + (8 << 20),
                         32 << 20))

    grid_spec = pltpu.PrefetchScalarGridSpec(
        num_scalar_prefetch=2,                # flat history ids + target ids
        grid=(nt,),
        in_specs=in_specs,
        out_specs=out_spec,
        scratch_shapes=scratch)

    out = pl.pallas_call(
        kernel,
        out_shape=jax.ShapeDtypeStruct((B_pad, 1), jnp.float32),
        grid_spec=grid_spec,
        compiler_params=pltpu.CompilerParams(
            dimension_semantics=("parallel",),
            vmem_limit_bytes=vmem_limit),
    )(
        hist_p.reshape(-1),                   # scalar prefetch: flat history ids
        item_p,                               # scalar prefetch: target item ids
        hist_p,
        bias_p.reshape(B_pad, 1),
        *tables,
    )
    return out[:B, 0]                         # squeeze(-1): (B,)


def fism_forward(user_idx, item_idx, params, trn_pos_per_user, alpha, *, path=None):
    """Pallas equivalent of Module.forward(user_idx, item_idx) -> (B,) logits.

    path: None (auto), "vmem" (tables resident in VMEM) or "hbm" (row-DMA gather).
    """
    B = user_idx.shape[0]
    H = trn_pos_per_user.shape[1]
    # Bound the SMEM-resident id arrays per pallas_call; larger batches are
    # processed in chunks so SMEM usage never scales with the full batch.
    max_chunk = max(128, (_SMEM_IDS_BUDGET // (4 * (H + 1))) // 128 * 128)
    if B <= max_chunk:
        return _fism_chunk(user_idx, item_idx, params, trn_pos_per_user, alpha, path)
    outs = []
    for s in range(0, B, max_chunk):
        e = min(B, s + max_chunk)
        outs.append(_fism_chunk(user_idx[s:e], item_idx[s:e], params,
                                trn_pos_per_user, alpha, path))
    return jnp.concatenate(outs, axis=0)


# --------------------------------------------------------------------------- #
# Pure-JAX reference + init                                                    #
# --------------------------------------------------------------------------- #
def fism_reference(user_idx, item_idx, params, trn_pos_per_user, alpha):
    """Pure-JAX transcription of the PyTorch module, for verification."""
    n_items = params["embed_hist"].shape[0] - 1
    user_histories = trn_pos_per_user[user_idx]                          # (B, H)
    mask_target = user_histories == item_idx[:, None]
    mask_padding = user_histories == n_items
    mask = mask_target | mask_padding
    hist_slice = params["embed_hist"][user_histories]                    # (B, H, F)
    masked = hist_slice * (~mask)[:, :, None]
    sum_hist = masked.sum(axis=1)
    num_hist = jnp.maximum(mask[:, :, None].sum(axis=1).astype(jnp.float32), 1e-8)
    context = sum_hist / num_hist ** alpha
    target = params["embed_target"][item_idx]
    dot = (context * target).sum(axis=1, keepdims=True)
    b_u = params["bias_user"][user_idx]
    b_i = params["bias_item"][item_idx]
    return (b_u + b_i + dot)[:, 0]


def init_params(key, n_users, n_items, n_factors):
    """nn.Embedding default init: N(0, 1), with padding rows zeroed."""
    k1, k2, k3, k4 = jax.random.split(key, 4)
    embed_hist = jax.random.normal(k1, (n_items + 1, n_factors), jnp.float32)
    embed_target = jax.random.normal(k2, (n_items + 1, n_factors), jnp.float32)
    bias_user = jax.random.normal(k3, (n_users + 1, 1), jnp.float32)
    bias_item = jax.random.normal(k4, (n_items + 1, 1), jnp.float32)
    embed_hist = embed_hist.at[n_items].set(0.0)     # padding_idx = n_items
    embed_target = embed_target.at[n_items].set(0.0)
    bias_user = bias_user.at[n_users].set(0.0)       # padding_idx = n_users
    bias_item = bias_item.at[n_items].set(0.0)
    return {
        "embed_hist": embed_hist,
        "embed_target": embed_target,
        "bias_user": bias_user,
        "bias_item": bias_item,
    }


if __name__ == "__main__":
    n_users, n_items, n_factors = 12, 20, 32
    hist_len, batch = 8, 8
    alpha = 0.5

    key = jax.random.PRNGKey(0)
    kp, kh, km, ku, ki = jax.random.split(key, 5)

    params = init_params(kp, n_users, n_items, n_factors)

    # Per-user positive-item history, padded with n_items.
    trn_pos = jax.random.randint(kh, (n_users, hist_len), 0, n_items, jnp.int32)
    pad_mask = jax.random.bernoulli(km, 0.25, (n_users, hist_len))
    trn_pos_per_user = jnp.where(pad_mask, n_items, trn_pos).astype(jnp.int32)

    user_idx = jax.random.randint(ku, (batch,), 0, n_users, jnp.int32)
    item_idx = jax.random.randint(ki, (batch,), 0, n_items, jnp.int32)

    ref = fism_reference(user_idx, item_idx, params, trn_pos_per_user, alpha)

    # Fast path: tables resident in VMEM (auto-selected for small vocabularies).
    out_vmem = jax.block_until_ready(
        fism_forward(user_idx, item_idx, params, trn_pos_per_user, alpha,
                     path="vmem"))
    # Large-vocabulary path: HBM tables + pipelined row-DMA gather.
    out_hbm = jax.block_until_ready(
        fism_forward(user_idx, item_idx, params, trn_pos_per_user, alpha,
                     path="hbm"))

    assert out_vmem.shape == (batch,)
    assert jnp.allclose(out_vmem, ref, atol=1e-4, rtol=1e-4), (out_vmem, ref)
    assert jnp.allclose(out_hbm, ref, atol=1e-4, rtol=1e-4), (out_hbm, ref)

    print("KERNEL_OK")
</pallas_src>

<mosaic_0001>
module attributes {stable_mosaic.version = 11 : i64} {
  func.func @_fism_kernel_vmem(%arg0: i32, %arg1: memref<64xi32, #tpu.memory_space<smem>>, %arg2: memref<8xi32, #tpu.memory_space<smem>>, %arg3: memref<8x8xi32, #tpu.memory_space<vmem>>, %arg4: memref<8x1xf32, #tpu.memory_space<vmem>>, %arg5: memref<24x32xf32, #tpu.memory_space<vmem>>, %arg6: memref<24x32xf32, #tpu.memory_space<vmem>>, %arg7: memref<8x1xf32, #tpu.memory_space<vmem>>, %arg8: memref<8x32xf32, #tpu.memory_space<vmem>>, %arg9: memref<8x32xf32, #tpu.memory_space<vmem>>) attributes {dimension_semantics = [#tpu.dimension_semantics<parallel>], iteration_bounds = array<i64: 1>, scalar_prefetch = 2 : i64, scratch_operands = 2 : i64, tpu.core_type = #tpu.core_type<tc>, window_params = [{transform_indices = @transform_0, window_bounds = array<i64: 8, 8>}, {transform_indices = @transform_1, window_bounds = array<i64: 8, 1>}, {pipeline_mode = #tpu.pipeline_mode<synchronous>, transform_indices = @transform_2, window_bounds = array<i64: 24, 32>}, {pipeline_mode = #tpu.pipeline_mode<synchronous>, transform_indices = @transform_3, window_bounds = array<i64: 24, 32>}, {transform_indices = @transform_4, window_bounds = array<i64: 8, 1>}]} {
    %c64_i32 = arith.constant 64 : i32
    %0 = arith.muli %arg0, %c64_i32 : i32
    %c8_i32 = arith.constant 8 : i32
    %1 = arith.muli %arg0, %c8_i32 : i32
    %c0_i32 = arith.constant 0 : i32
    %c8_i32_0 = arith.constant 8 : i32
    %2 = arith.addi %c0_i32, %c8_i32_0 : i32
    %c1_i32 = arith.constant 1 : i32
    scf.for %arg10 = %c0_i32 to %2 step %c1_i32  : i32 {
      %cst_13 = arith.constant 0.000000e+00 : f32
      %22 = vector.broadcast %cst_13 : f32 to vector<32xf32>
      %c0_i32_14 = arith.constant 0 : i32
      %c8_i32_15 = arith.constant 8 : i32
      %23 = arith.muli %arg10, %c8_i32_15 : i32
      %24 = arith.addi %0, %23 : i32
      %25 = arith.addi %24, %c0_i32_14 : i32
      %26 = arith.index_cast %25 : i32 to index
      %27 = memref.load %arg1[%26] : memref<64xi32, #tpu.memory_space<smem>>
      %c20_i32_16 = arith.constant 20 : i32
      %28 = arith.cmpi ne, %27, %c20_i32_16 : i32
      %29 = arith.extui %28 : i1 to i32
      %30 = arith.sitofp %29 : i32 to f32
      %31 = arith.index_cast %27 : i32 to index
      %c0_17 = arith.constant 0 : index
      %32 = vector.load %arg5[%31, %c0_17] : memref<24x32xf32, #tpu.memory_space<vmem>>, vector<1x32xf32>
      %33 = vector.shape_cast %32 : vector<1x32xf32> to vector<32xf32>
      %34 = vector.broadcast %30 : f32 to vector<32xf32>
      %35 = arith.mulf %33, %34 : vector<32xf32>
      %36 = arith.addf %22, %35 : vector<32xf32>
      %c1_i32_18 = arith.constant 1 : i32
      %c8_i32_19 = arith.constant 8 : i32
      %37 = arith.muli %arg10, %c8_i32_19 : i32
      %38 = arith.addi %0, %37 : i32
      %39 = arith.addi %38, %c1_i32_18 : i32
      %40 = arith.index_cast %39 : i32 to index
      %41 = memref.load %arg1[%40] : memref<64xi32, #tpu.memory_space<smem>>
      %c20_i32_20 = arith.constant 20 : i32
      %42 = arith.cmpi ne, %41, %c20_i32_20 : i32
      %43 = arith.extui %42 : i1 to i32
      %44 = arith.sitofp %43 : i32 to f32
      %45 = arith.index_cast %41 : i32 to index
      %c0_21 = arith.constant 0 : index
      %46 = vector.load %arg5[%45, %c0_21] : memref<24x32xf32, #tpu.memory_space<vmem>>, vector<1x32xf32>
      %47 = vector.shape_cast %46 : vector<1x32xf32> to vector<32xf32>
      %48 = vector.broadcast %44 : f32 to vector<32xf32>
      %49 = arith.mulf %47, %48 : vector<32xf32>
      %50 = arith.addf %36, %49 : vector<32xf32>
      %c2_i32 = arith.constant 2 : i32
      %c8_i32_22 = arith.constant 8 : i32
      %51 = arith.muli %arg10, %c8_i32_22 : i32
      %52 = arith.addi %0, %51 : i32
      %53 = arith.addi %52, %c2_i32 : i32
      %54 = arith.index_cast %53 : i32 to index
      %55 = memref.load %arg1[%54] : memref<64xi32, #tpu.memory_space<smem>>
      %c20_i32_23 = arith.constant 20 : i32
      %56 = arith.cmpi ne, %55, %c20_i32_23 : i32
      %57 = arith.extui %56 : i1 to i32
      %58 = arith.sitofp %57 : i32 to f32
      %59 = arith.index_cast %55 : i32 to index
      %c0_24 = arith.constant 0 : index
      %60 = vector.load %arg5[%59, %c0_24] : memref<24x32xf32, #tpu.memory_space<vmem>>, vector<1x32xf32>
      %61 = vector.shape_cast %60 : vector<1x32xf32> to vector<32xf32>
      %62 = vector.broadcast %58 : f32 to vector<32xf32>
      %63 = arith.mulf %61, %62 : vector<32xf32>
      %64 = arith.addf %50, %63 : vector<32xf32>
      %c3_i32 = arith.constant 3 : i32
      %c8_i32_25 = arith.constant 8 : i32
      %65 = arith.muli %arg10, %c8_i32_25 : i32
      %66 = arith.addi %0, %65 : i32
      %67 = arith.addi %66, %c3_i32 : i32
      %68 = arith.index_cast %67 : i32 to index
      %69 = memref.load %arg1[%68] : memref<64xi32, #tpu.memory_space<smem>>
      %c20_i32_26 = arith.constant 20 : i32
      %70 = arith.cmpi ne, %69, %c20_i32_26 : i32
      %71 = arith.extui %70 : i1 to i32
      %72 = arith.sitofp %71 : i32 to f32
      %73 = arith.index_cast %69 : i32 to index
      %c0_27 = arith.constant 0 : index
      %74 = vector.load %arg5[%73, %c0_27] : memref<24x32xf32, #tpu.memory_space<vmem>>, vector<1x32xf32>
      %75 = vector.shape_cast %74 : vector<1x32xf32> to vector<32xf32>
      %76 = vector.broadcast %72 : f32 to vector<32xf32>
      %77 = arith.mulf %75, %76 : vector<32xf32>
      %78 = arith.addf %64, %77 : vector<32xf32>
      %c4_i32 = arith.constant 4 : i32
      %c8_i32_28 = arith.constant 8 : i32
      %79 = arith.muli %arg10, %c8_i32_28 : i32
      %80 = arith.addi %0, %79 : i32
      %81 = arith.addi %80, %c4_i32 : i32
      %82 = arith.index_cast %81 : i32 to index
      %83 = memref.load %arg1[%82] : memref<64xi32, #tpu.memory_space<smem>>
      %c20_i32_29 = arith.constant 20 : i32
      %84 = arith.cmpi ne, %83, %c20_i32_29 : i32
      %85 = arith.extui %84 : i1 to i32
      %86 = arith.sitofp %85 : i32 to f32
      %87 = arith.index_cast %83 : i32 to index
      %c0_30 = arith.constant 0 : index
      %88 = vector.load %arg5[%87, %c0_30] : memref<24x32xf32, #tpu.memory_space<vmem>>, vector<1x32xf32>
      %89 = vector.shape_cast %88 : vector<1x32xf32> to vector<32xf32>
      %90 = vector.broadcast %86 : f32 to vector<32xf32>
      %91 = arith.mulf %89, %90 : vector<32xf32>
      %92 = arith.addf %78, %91 : vector<32xf32>
      %c5_i32 = arith.constant 5 : i32
      %c8_i32_31 = arith.constant 8 : i32
      %93 = arith.muli %arg10, %c8_i32_31 : i32
      %94 = arith.addi %0, %93 : i32
      %95 = arith.addi %94, %c5_i32 : i32
      %96 = arith.index_cast %95 : i32 to index
      %97 = memref.load %arg1[%96] : memref<64xi32, #tpu.memory_space<smem>>
      %c20_i32_32 = arith.constant 20 : i32
      %98 = arith.cmpi ne, %97, %c20_i32_32 : i32
      %99 = arith.extui %98 : i1 to i32
      %100 = arith.sitofp %99 : i32 to f32
      %101 = arith.index_cast %97 : i32 to index
      %c0_33 = arith.constant 0 : index
      %102 = vector.load %arg5[%101, %c0_33] : memref<24x32xf32, #tpu.memory_space<vmem>>, vector<1x32xf32>
      %103 = vector.shape_cast %102 : vector<1x32xf32> to vector<32xf32>
      %104 = vector.broadcast %100 : f32 to vector<32xf32>
      %105 = arith.mulf %103, %104 : vector<32xf32>
      %106 = arith.addf %92, %105 : vector<32xf32>
      %c6_i32 = arith.constant 6 : i32
      %c8_i32_34 = arith.constant 8 : i32
      %107 = arith.muli %arg10, %c8_i32_34 : i32
      %108 = arith.addi %0, %107 : i32
      %109 = arith.addi %108, %c6_i32 : i32
      %110 = arith.index_cast %109 : i32 to index
      %111 = memref.load %arg1[%110] : memref<64xi32, #tpu.memory_space<smem>>
      %c20_i32_35 = arith.constant 20 : i32
      %112 = arith.cmpi ne, %111, %c20_i32_35 : i32
      %113 = arith.extui %112 : i1 to i32
      %114 = arith.sitofp %113 : i32 to f32
      %115 = arith.index_cast %111 : i32 to index
      %c0_36 = arith.constant 0 : index
      %116 = vector.load %arg5[%115, %c0_36] : memref<24x32xf32, #tpu.memory_space<vmem>>, vector<1x32xf32>
      %117 = vector.shape_cast %116 : vector<1x32xf32> to vector<32xf32>
      %118 = vector.broadcast %114 : f32 to vector<32xf32>
      %119 = arith.mulf %117, %118 : vector<32xf32>
      %120 = arith.addf %106, %119 : vector<32xf32>
      %c7_i32 = arith.constant 7 : i32
      %c8_i32_37 = arith.constant 8 : i32
      %121 = arith.muli %arg10, %c8_i32_37 : i32
      %122 = arith.addi %0, %121 : i32
      %123 = arith.addi %122, %c7_i32 : i32
      %124 = arith.index_cast %123 : i32 to index
      %125 = memref.load %arg1[%124] : memref<64xi32, #tpu.memory_space<smem>>
      %c20_i32_38 = arith.constant 20 : i32
      %126 = arith.cmpi ne, %125, %c20_i32_38 : i32
      %127 = arith.extui %126 : i1 to i32
      %128 = arith.sitofp %127 : i32 to f32
      %129 = arith.index_cast %125 : i32 to index
      %c0_39 = arith.constant 0 : index
      %130 = vector.load %arg5[%129, %c0_39] : memref<24x32xf32, #tpu.memory_space<vmem>>, vector<1x32xf32>
      %131 = vector.shape_cast %130 : vector<1x32xf32> to vector<32xf32>
      %132 = vector.broadcast %128 : f32 to vector<32xf32>
      %133 = arith.mulf %131, %132 : vector<32xf32>
      %134 = arith.addf %120, %133 : vector<32xf32>
      %c8_i32_40 = arith.constant 8 : i32
      %135 = arith.index_cast %arg10 : i32 to index
      %c0_41 = arith.constant 0 : index
      %136 = vector.load %arg8[%135, %c0_41] : memref<8x32xf32, #tpu.memory_space<vmem>>, vector<1x32xf32>
      %137 = vector.shape_cast %136 : vector<1x32xf32> to vector<32xf32>
      %138 = vector.shape_cast %134 : vector<32xf32> to vector<1x32xf32>
      tpu.vector_store %arg8[%135, %c0_41], %138 {strides = array<i32>} : memref<8x32xf32, #tpu.memory_space<vmem>>, vector<1x32xf32>,
      %139 = arith.addi %1, %arg10 : i32
      %140 = arith.index_cast %139 : i32 to index
      %141 = memref.load %arg2[%140] : memref<8xi32, #tpu.memory_space<smem>>
      %142 = arith.index_cast %141 : i32 to index
      %c0_42 = arith.constant 0 : index
      %143 = vector.load %arg6[%142, %c0_42] : memref<24x32xf32, #tpu.memory_space<vmem>>, vector<1x32xf32>
      %144 = vector.shape_cast %143 : vector<1x32xf32> to vector<32xf32>
      %145 = arith.index_cast %arg10 : i32 to index
      %c0_43 = arith.constant 0 : index
      %146 = vector.load %arg9[%145, %c0_43] : memref<8x32xf32, #tpu.memory_space<vmem>>, vector<1x32xf32>
      %147 = vector.shape_cast %146 : vector<1x32xf32> to vector<32xf32>
      %148 = vector.shape_cast %144 : vector<32xf32> to vector<1x32xf32>
      tpu.vector_store %arg9[%145, %c0_43], %148 {strides = array<i32>} : memref<8x32xf32, #tpu.memory_space<vmem>>, vector<1x32xf32>,
    }
    %c8_i32_1 = arith.constant 8 : i32
    %c0 = arith.constant 0 : index
    %c0_2 = arith.constant 0 : index
    %3 = vector.load %arg3[%c0, %c0_2] : memref<8x8xi32, #tpu.memory_space<vmem>>, vector<8x8xi32>
    %c0_3 = arith.constant 0 : index
    %c0_4 = arith.constant 0 : index
    %4 = vector.load %arg8[%c0_3, %c0_4] : memref<8x32xf32, #tpu.memory_space<vmem>>, vector<8x32xf32>
    %c0_5 = arith.constant 0 : index
    %c0_6 = arith.constant 0 : index
    %5 = vector.load %arg9[%c0_5, %c0_6] : memref<8x32xf32, #tpu.memory_space<vmem>>, vector<8x32xf32>
    %c20_i32 = arith.constant 20 : i32
    %6 = vector.broadcast %c20_i32 : i32 to vector<8x8xi32>
    %7 = arith.cmpi eq, %3, %6 : vector<8x8xi32>
    %8 = arith.extui %7 : vector<8x8xi1> to vector<8x8xi32>
    %9 = arith.sitofp %8 : vector<8x8xi32> to vector<8x8xf32>
    %cst = arith.constant dense<0.000000e+00> : vector<8xf32>
    %10 = vector.multi_reduction <add>, %9, %cst [1] : vector<8x8xf32> to vector<8xf32>
    %11 = vector.shape_cast %10 : vector<8xf32> to vector<8x1xf32>
    %cst_7 = arith.constant 9.99999993E-9 : f32
    %12 = vector.broadcast %cst_7 : f32 to vector<8x1xf32>
    %13 = arith.maximumf %11, %12 : vector<8x1xf32>
    %14 = math.rsqrt %13 : vector<8x1xf32>
    %15 = arith.mulf %4, %5 : vector<8x32xf32>
    %cst_8 = arith.constant dense<0.000000e+00> : vector<8xf32>
    %16 = vector.multi_reduction <add>, %15, %cst_8 [1] : vector<8x32xf32> to vector<8xf32>
    %17 = vector.shape_cast %16 : vector<8xf32> to vector<8x1xf32>
    %c0_9 = arith.constant 0 : index
    %c0_10 = arith.constant 0 : index
    %18 = vector.load %arg4[%c0_9, %c0_10] : memref<8x1xf32, #tpu.memory_space<vmem>>, vector<8x1xf32>
    %19 = arith.mulf %17, %14 : vector<8x1xf32>
    %20 = arith.addf %18, %19 : vector<8x1xf32>
    %c0_11 = arith.constant 0 : index
    %c0_12 = arith.constant 0 : index
    %21 = vector.load %arg7[%c0_11, %c0_12] : memref<8x1xf32, #tpu.memory_space<vmem>>, vector<8x1xf32>
    tpu.vector_store %arg7[%c0_11, %c0_12], %20 {strides = array<i32>} : memref<8x1xf32, #tpu.memory_space<vmem>>, vector<8x1xf32>,
    return
  }
  func.func @transform_0(%arg0: i32, %arg1: memref<64xi32, #tpu.memory_space<smem>>, %arg2: memref<8xi32, #tpu.memory_space<smem>>) -> (i32, i32) {
    %c0_i32 = arith.constant 0 : i32
    %c0_i32_0 = arith.constant 0 : i32
    return %arg0, %c0_i32 : i32, i32
  }
  func.func @transform_1(%arg0: i32, %arg1: memref<64xi32, #tpu.memory_space<smem>>, %arg2: memref<8xi32, #tpu.memory_space<smem>>) -> (i32, i32) {
    %c0_i32 = arith.constant 0 : i32
    %c0_i32_0 = arith.constant 0 : i32
    return %arg0, %c0_i32 : i32, i32
  }
  func.func @transform_2(%arg0: i32, %arg1: memref<64xi32, #tpu.memory_space<smem>>, %arg2: memref<8xi32, #tpu.memory_space<smem>>) -> (i32, i32) {
    %c0_i32 = arith.constant 0 : i32
    %c0_i32_0 = arith.constant 0 : i32
    %c0_i32_1 = arith.constant 0 : i32
    return %c0_i32, %c0_i32_0 : i32, i32
  }
  func.func @transform_3(%arg0: i32, %arg1: memref<64xi32, #tpu.memory_space<smem>>, %arg2: memref<8xi32, #tpu.memory_space<smem>>) -> (i32, i32) {
    %c0_i32 = arith.constant 0 : i32
    %c0_i32_0 = arith.constant 0 : i32
    %c0_i32_1 = arith.constant 0 : i32
    return %c0_i32, %c0_i32_0 : i32, i32
  }
  func.func @transform_4(%arg0: i32, %arg1: memref<64xi32, #tpu.memory_space<smem>>, %arg2: memref<8xi32, #tpu.memory_space<smem>>) -> (i32, i32) {
    %c0_i32 = arith.constant 0 : i32
    %c0_i32_0 = arith.constant 0 : i32
    return %arg0, %c0_i32 : i32, i32
  }
}

</mosaic_0001>

<llo_original>
// kernel: tpu_custom_call.1
$region0: #{tpu_custom_call.1}
  #allocation0 [shape = 'u32[]', space=smem, size = 0x4, offset = 0x4, fixed_abs, tag = 'smem constant byte address 0x4 - core index']
  #allocation1 [shape = 'u32[72,128]{1,0:T(1,128)}', space=vmem, size = 0x9000, scoped, tag = 'internal scratch']
  #allocation2 [shape = 'f32[8,32]{1,0:T(8,128)}', space=vmem, size = 0x1000, scoped, tag = 'scratch operand']
  #allocation3 [shape = 'f32[8,32]{1,0:T(8,128)}', space=vmem, size = 0x1000, scoped, tag = 'scratch operand']
  #allocation4 [shape = 's32[1]{0}', space=sflag, size = 0x4, scoped, tag = 'scoped memory for tpu_custom_call.1']
  #allocation5 [shape = 'u8[512]{0}', space=smem, size = 0x200, scoped, tag = 'prefetched SMEM operand 0']
  #allocation6 [shape = 'u8[512]{0}', space=smem, size = 0x200, scoped, tag = 'prefetched SMEM operand 1']
  %s0 = inlined_call_operand.vmem [shape: s32[64], index: 0, kind: input, shape index: {}]
  %s1 = inlined_call_operand.hbm [shape: s32[8], index: 1, kind: input, shape index: {}]
  %s2 = inlined_call_operand.vmem [shape: s32[8,8], index: 2, kind: input, shape index: {}]
  %s3 = inlined_call_operand.vmem [shape: f32[8,1], index: 3, kind: input, shape index: {}]
  %s4 = inlined_call_operand.hbm [shape: f32[24,32], index: 4, kind: input, shape index: {}]
  %s5 = inlined_call_operand.hbm [shape: f32[24,32], index: 5, kind: input, shape index: {}]
  %s6 = inlined_call_operand.vmem [shape: f32[8,1], index: 6, kind: output, shape index: {}]
  %s7 = sld [smem:[#allocation0]]
  $region41: #{tpu_custom_call.1} parent=0
    _
  %s9 = ssub.s32 1, %s7
  %s10 = scalar_select 0, %s9, %s7
  %s12 = sshll.u32 %s0, 4
  %s13 = int_to_ptr.vmem [resolvable:$true] %s12
  %15 = dma.vmem_to_smem %s13, 16, [#allocation5], [#allocation4]
  %s17 = sshll.u32 %s1, 4
  %s18 = int_to_ptr.hbm [resolvable:$true] %s17
  %20 = dma.hbm_to_smem %s18, 16, [#allocation6], [#allocation4]
  %22 = dma.done [#allocation4], 32
  %23 = sfence
  $region1: #{tpu_custom_call.1} parent=0
    #allocation7 [shape = 'u8[12288]{0}', space=vmem, size = 0x3000, scoped, tag = 'input window, operand 4, single buffered']
    #allocation8 [shape = 's32[1]{0}', space=sflag, size = 0x4, scoped, tag = 'scoped memory for tpu_custom_call.1']
    #allocation9 [shape = 'u8[12288]{0}', space=vmem, size = 0x3000, scoped, tag = 'input window, operand 5, single buffered']
    #allocation10 [shape = 's32[1]{0}', space=sflag, size = 0x4, scoped, tag = 'scoped memory for tpu_custom_call.1']
    %24 = vsyncpa [#allocation8], 0
    %25 = vsyncpa [#allocation10], 0
    // Predicated region
    $region2: #{tpu_custom_call.1} parent=1 // pred_check
      _
    $region3: #{tpu_custom_call.1} parent=1 // pred_check_branch
      %27 = sbr.rel (0) target = $region5
    $region4: #{tpu_custom_call.1} parent=1 // pred_region
      _
    $region5: #{tpu_custom_call.1} parent=1 // pred_fallthru
      _
    // Predicated region
    $region6: #{tpu_custom_call.1} parent=1 // pred_check
      _
    $region7: #{tpu_custom_call.1} parent=1 // pred_check_branch
      %29 = sbr.rel (0) target = $region9
    $region8: #{tpu_custom_call.1} parent=1 // pred_region
      _
    $region9: #{tpu_custom_call.1} parent=1 // pred_fallthru
      _
    // Predicated region
    $region10: #{tpu_custom_call.1} parent=1 // pred_check
      _
    $region11: #{tpu_custom_call.1} parent=1 // pred_check_branch
      %31 = sbr.rel (0) target = $region13
    $region12: #{tpu_custom_call.1} parent=1 // pred_region
      %33 = vsyncadd [#allocation8], 0
      %s34 = sshll.u32 %s4, 4
      %s35 = int_to_ptr.hbm [resolvable:$true] %s34
      %s36 = sshll.u32 [#allocation7], 4
      %s37 = int_to_ptr.vmem [resolvable:$true] %s36
      %42 = dma.hbm_to_vmem [thread:$0]  %s35, 384, %s37, [#allocation8], 128, 128, 8
    $region13: #{tpu_custom_call.1} parent=1 // pred_fallthru
      _
    // Predicated region
    $region14: #{tpu_custom_call.1} parent=1 // pred_check
      _
    $region15: #{tpu_custom_call.1} parent=1 // pred_check_branch
      %44 = sbr.rel (0) target = $region17
    $region16: #{tpu_custom_call.1} parent=1 // pred_region
      %46 = vsyncadd [#allocation10], 0
      %s47 = sshll.u32 %s5, 4
      %s48 = int_to_ptr.hbm [resolvable:$true] %s47
      %s49 = sshll.u32 [#allocation9], 4
      %s50 = int_to_ptr.vmem [resolvable:$true] %s49
      %55 = dma.hbm_to_vmem [thread:$0]  %s48, 384, %s50, [#allocation10], 128, 128, 8
    $region17: #{tpu_custom_call.1} parent=1 // pred_fallthru
      _
    // Predicated region
    $region18: #{tpu_custom_call.1} parent=1 // pred_check
      _
    $region19: #{tpu_custom_call.1} parent=1 // pred_check_branch
      %57 = sbr.rel (0) target = $region21
    $region20: #{tpu_custom_call.1} parent=1 // pred_region
      %59 = dma.done [#allocation8], 384
    $region21: #{tpu_custom_call.1} parent=1 // pred_fallthru
      _
    // Predicated region
    $region22: #{tpu_custom_call.1} parent=1 // pred_check
      _
    $region23: #{tpu_custom_call.1} parent=1 // pred_check_branch
      %61 = sbr.rel (0) target = $region25
    $region24: #{tpu_custom_call.1} parent=1 // pred_region
      %63 = dma.done [#allocation10], 384
    $region25: #{tpu_custom_call.1} parent=1 // pred_fallthru
      _
    %s64 = smul.u32 0, 64
    %s65 = smul.u32 0, 8
    loop: start=0, step=1, limit=8
    $region26: #{tpu_custom_call.1} parent=1 // loop_pre_header
      _
    $region27: #{tpu_custom_call.1} parent=1 // loop_header
      %s67 = sphi 0, %s71
      %p68 = scmp.ge.s32.totalorder %s67, 8
    $region28: #{tpu_custom_call.1} parent=1 // loop_header_branch
      %70 = sbr.rel (%p68) target = $region32
    $region29: #{tpu_custom_call.1} parent=1 // loop_body
      %s72 = smul.u32 %s67, 8
      %s73 = sadd.s32 %s64, %s72
      %s74 = sld [smem:[#allocation5 + %s73]]
      %p75 = scmp.ne.s32.totalorder %s74, 20
      %s76 = scalar_select %p75, 1, 0
      %s77 = scvt.s32.f32 %s76
      %s78 = scalar_lea.vmem [#allocation7], %s74
      %v79 = vld [vmem:[%s78] sm:$0x1]
      %v80 = vstv %s77
      %v81 = vmul.f32 %v79, %v80
      %v82 = vadd.f32 %v81, 0.0
      %s83 = sadd.s32 %s73, 1
      %s84 = sld [smem:[#allocation5 + %s83]]
      %p85 = scmp.ne.s32.totalorder %s84, 20
      %s86 = scalar_select %p85, 1, 0
      %s87 = scvt.s32.f32 %s86
      %s88 = scalar_lea.vmem [#allocation7], %s84
      %v89 = vld [vmem:[%s88] sm:$0x1]
      %v90 = vstv %s87
      %v91 = vmul.f32 %v89, %v90
      %v92 = vadd.f32 %v82, %v91
      %s93 = sadd.s32 %s73, 2
      %s94 = sld [smem:[#allocation5 + %s93]]
      %p95 = scmp.ne.s32.totalorder %s94, 20
      %s96 = scalar_select %p95, 1, 0
      %s97 = scvt.s32.f32 %s96
      %s98 = scalar_lea.vmem [#allocation7], %s94
      %v99 = vld [vmem:[%s98] sm:$0x1]
      %v100 = vstv %s97
      %v101 = vmul.f32 %v99, %v100
      %v102 = vadd.f32 %v92, %v101
      %s103 = sadd.s32 %s73, 3
      %s104 = sld [smem:[#allocation5 + %s103]]
      %p105 = scmp.ne.s32.totalorder %s104, 20
      %s106 = scalar_select %p105, 1, 0
      %s107 = scvt.s32.f32 %s106
      %s108 = scalar_lea.vmem [#allocation7], %s104
      %v109 = vld [vmem:[%s108] sm:$0x1]
      %v110 = vstv %s107
      %v111 = vmul.f32 %v109, %v110
      %v112 = vadd.f32 %v102, %v111
      %s113 = sadd.s32 %s73, 4
      %s114 = sld [smem:[#allocation5 + %s113]]
      %p115 = scmp.ne.s32.totalorder %s114, 20
      %s116 = scalar_select %p115, 1, 0
      %s117 = scvt.s32.f32 %s116
      %s118 = scalar_lea.vmem [#allocation7], %s114
      %v119 = vld [vmem:[%s118] sm:$0x1]
      %v120 = vstv %s117
      %v121 = vmul.f32 %v119, %v120
      %v122 = vadd.f32 %v112, %v121
      %s123 = sadd.s32 %s73, 5
      %s124 = sld [smem:[#allocation5 + %s123]]
      %p125 = scmp.ne.s32.totalorder %s124, 20
      %s126 = scalar_select %p125, 1, 0
      %s127 = scvt.s32.f32 %s126
      %s128 = scalar_lea.vmem [#allocation7], %s124
      %v129 = vld [vmem:[%s128] sm:$0x1]
      %v130 = vstv %s127
      %v131 = vmul.f32 %v129, %v130
      %v132 = vadd.f32 %v122, %v131
      %s133 = sadd.s32 %s73, 6
      %s134 = sld [smem:[#allocation5 + %s133]]
      %p135 = scmp.ne.s32.totalorder %s134, 20
      %s136 = scalar_select %p135, 1, 0
      %s137 = scvt.s32.f32 %s136
      %s138 = scalar_lea.vmem [#allocation7], %s134
      %v139 = vld [vmem:[%s138] sm:$0x1]
      %v140 = vstv %s137
      %v141 = vmul.f32 %v139, %v140
      %v142 = vadd.f32 %v132, %v141
      %s143 = sadd.s32 %s73, 7
      %s144 = sld [smem:[#allocation5 + %s143]]
      %p145 = scmp.ne.s32.totalorder %s144, 20
      %s146 = scalar_select %p145, 1, 0
      %s147 = scvt.s32.f32 %s146
      %s148 = scalar_lea.vmem [#allocation7], %s144
      %v149 = vld [vmem:[%s148] sm:$0x1]
      %v150 = vstv %s147
      %v151 = vmul.f32 %v149, %v150
      %v152 = vadd.f32 %v142, %v151
      %s153 = scalar_lea.vmem [#allocation2], %s67
      %vm154 = vcmask 253952
      %155 = vst.msk [vmem:[%s153] sm:$0x1] %vm154, %v152
      %s156 = sadd.s32 %s65, %s67
      %s157 = sld [smem:[#allocation6 + %s156]]
      %s158 = scalar_lea.vmem [#allocation9], %s157
      %v159 = vld [vmem:[%s158] sm:$0x1]
      %s160 = scalar_lea.vmem [#allocation3], %s67
      %161 = vst.msk [vmem:[%s160] sm:$0x1] %vm154, %v159
    $region30: #{tpu_custom_call.1} parent=1 // loop_footer
      %s71 = sadd.s32 1, %s67
    $region31: #{tpu_custom_call.1} parent=1 // loop_footer_branch
      %66 = sbr.rel target = $region27
    $region32: #{tpu_custom_call.1} parent=1 // loop_exit
      _
    %v162 = vld [vmem:[%s2] sm:$0xff]
    %v163 = vld [vmem:[#allocation2] sm:$0xff]
    %v164 = vld [vmem:[#allocation3] sm:$0xff]
    %vm165 = vcmp.eq.s32.totalorder %v162, 20
    %v166 = vsel %vm165, 1, 0
    %v167 = vcvt.s32.f32 %v166
    %vm168 = vcmask 64512
    %v169 = vsel %vm168, %v167, 0.0
    %170 = vadd.xlane.f32.xlu0 %v169
    %v171 = vpop.xlane.xlu0 %170
    %v172 = vmax.f32 %v171, 1e-08
    %v173 = vrsqrt.pop %v172
    %v174 = vmul.f32 %v173, %v172
    %v175 = vmul.f32 %v174, %v173
    %v176 = vmul.f32 0.5, %v175
    %v177 = vsub.f32 1.5, %v176
    %v178 = vmul.f32 %v173, %v177
    %vm179 = vweird.f32 %v172
    %vm180 = vweird.f32 %v173
    %vm181 = vmor %vm179, %vm180
    %v182 = vsel %vm181, %v173, %v178
    %v183 = vmul.f32 %v163, %v164
    %vm184 = vcmask 261120
    %v185 = vsel %vm184, %v183, 0.0
    %186 = vadd.xlane.f32.xlu0 %v185
    %v187 = vpop.xlane.xlu0 %186
    %v188 = vld [vmem:[%s3] sm:$0xff]
    %v189 = vmul.f32 %v187, %v182
    %v190 = vadd.f32 %v188, %v189
    %vm191 = vcmask 7168
    %192 = vst.msk [vmem:[%s6] sm:$0xff] %vm191, %v190
    // Predicated region
    $region33: #{tpu_custom_call.1} parent=1 // pred_check
      _
    $region34: #{tpu_custom_call.1} parent=1 // pred_check_branch
      %194 = sbr.rel (0) target = $region36
    $region35: #{tpu_custom_call.1} parent=1 // pred_region
      _
    $region36: #{tpu_custom_call.1} parent=1 // pred_fallthru
      _
    // Predicated region
    $region37: #{tpu_custom_call.1} parent=1 // pred_check
      _
    $region38: #{tpu_custom_call.1} parent=1 // pred_check_branch
      %196 = sbr.rel (0) target = $region40
    $region39: #{tpu_custom_call.1} parent=1 // pred_region
      _
    $region40: #{tpu_custom_call.1} parent=1 // pred_fallthru
      _
    %197 = vsyncpa [#allocation8], 1
    %198 = vsyncpa [#allocation10], 1

</llo_original>
